<compile_context>
chip_gen: v7x
topology: tpu7x:2x2x1
jax: 0.10.0
libtpu: 0.0.40
codegen_flags: <defaults>
</compile_context>

<pallas_src>
import functools
import math

import jax
import jax.numpy as jnp
from jax.experimental import pallas as pl
from jax.experimental.pallas import tpu as pltpu


def _round_up(x, m):
    return (x + m - 1) // m * m


# ---------------------------------------------------------------------------
# Kernel 1: fused QKV projection   (M, E) @ (E, 3*H_pad) + b
# ---------------------------------------------------------------------------
def _qkv_proj_kernel(x_ref, w_ref, b_ref, o_ref):
    acc = jnp.dot(x_ref[...], w_ref[...], preferred_element_type=jnp.float32)
    o_ref[...] = (acc + b_ref[...]).astype(o_ref.dtype)


def _qkv_projection(x2d, w_qkv, b_qkv, out_dtype):
    M, E = x2d.shape
    N = w_qkv.shape[1]
    tm = min(M, 512)          # M is always a multiple of tm (caller pads)
    grid_m = M // tm
    return pl.pallas_call(
        _qkv_proj_kernel,
        out_shape=jax.ShapeDtypeStruct((M, N), out_dtype),
        grid_spec=pltpu.PrefetchScalarGridSpec(
            num_scalar_prefetch=0,
            grid=(grid_m,),
            in_specs=[
                pl.BlockSpec((tm, E), lambda i: (i, 0)),
                # weight/bias block index is constant across the grid -> DMA'd
                # once and kept resident in VMEM.
                pl.BlockSpec((E, N), lambda i: (0, 0)),
                pl.BlockSpec((1, N), lambda i: (0, 0)),
            ],
            out_specs=pl.BlockSpec((tm, N), lambda i: (i, 0)),
        ),
        compiler_params=pltpu.CompilerParams(
            dimension_semantics=("parallel",)),
    )(x2d, w_qkv, b_qkv)


# ---------------------------------------------------------------------------
# Kernel 2: flash attention (online softmax over kv tiles)
# ---------------------------------------------------------------------------
def _flash_kernel(q_ref, k_ref, v_ref, o_ref, m_sc, l_sc, acc_sc,
                  *, scale, tk, seq_len, seq_pad):
    ki = pl.program_id(2)

    @pl.when(ki == 0)
    def _():
        m_sc[...] = jnp.full_like(m_sc, -jnp.inf)
        l_sc[...] = jnp.zeros_like(l_sc)
        acc_sc[...] = jnp.zeros_like(acc_sc)

    q = q_ref[0]            # (tq, H_pad)
    k = k_ref[0]            # (tk, H_pad)
    v = v_ref[0]            # (tk, H_pad)

    # scores = (q @ k^T) * scale, contracting the last dims (no k transpose).
    s = jax.lax.dot_general(
        q, k, dimension_numbers=(((1,), (1,)), ((), ())),
        preferred_element_type=jnp.float32) * scale            # (tq, tk)

    if seq_pad != seq_len:
        # Mask padded kv positions (static branch; skipped when S % tile == 0).
        kv_pos = ki * tk + jax.lax.broadcasted_iota(jnp.int32, s.shape, 1)
        s = jnp.where(kv_pos < seq_len, s, -1e30)

    m_prev = m_sc[...]
    m_new = jnp.maximum(m_prev, jnp.max(s, axis=-1, keepdims=True))
    alpha = jnp.exp(m_prev - m_new)
    p = jnp.exp(s - m_new)
    l_sc[...] = alpha * l_sc[...] + jnp.sum(p, axis=-1, keepdims=True)
    acc_sc[...] = alpha * acc_sc[...] + jnp.dot(
        p.astype(v.dtype), v, preferred_element_type=jnp.float32)
    m_sc[...] = m_new

    @pl.when(ki == pl.num_programs(2) - 1)
    def _():
        inv_l = pl.reciprocal(l_sc[...], approx=True)   # EUP vrcp, epilogue only
        o_ref[0] = (acc_sc[...] * inv_l).astype(o_ref.dtype)


def attention_head(x, wq, bq, wk, bk, wv, bv, *, mxu_dtype=None):
    """x: [B, S, E]; w*: [E, H]; b*: [1, H]  ->  [B, S, H].

    mxu_dtype=jnp.bfloat16 casts the matmul operands (recommended on v6e/v7x);
    softmax math and all accumulation stay in f32.
    """
    B, S, E = x.shape
    H = wq.shape[1]
    out_dtype = x.dtype
    compute_dtype = mxu_dtype if mxu_dtype is not None else x.dtype

    # --- lane-dense padding of the head dim ---------------------------------
    H_pad = _round_up(H, 128)

    def pad_w(w):
        return jnp.pad(w, ((0, 0), (0, H_pad - H)))

    def pad_b(b):
        return jnp.pad(b, ((0, 0), (0, H_pad - H)))

    w_qkv = jnp.concatenate([pad_w(wq), pad_w(wk), pad_w(wv)], axis=1)  # (E, 3*H_pad)
    b_qkv = jnp.concatenate([pad_b(bq), pad_b(bk), pad_b(bv)], axis=1)  # (1, 3*H_pad)
    w_qkv = w_qkv.astype(compute_dtype)
    b_qkv = b_qkv.astype(jnp.float32)

    # --- sequence tiling (8-aligned tiles; full seq if it is small) ---------
    S8 = _round_up(S, 8)
    tq = tk = S8 if S8 <= 256 else 256
    S_pad = _round_up(S, tq)

    # --- 1) fused QKV projection over all (batch * seq) rows ----------------
    x_pad = jnp.pad(x, ((0, 0), (0, S_pad - S), (0, 0)))
    M0 = B * S_pad
    tm = min(M0, 512)
    M_pad = _round_up(M0, tm)
    x2d = x_pad.reshape(M0, E).astype(compute_dtype)
    if M_pad != M0:
        x2d = jnp.pad(x2d, ((0, M_pad - M0), (0, 0)))

    qkv2d = _qkv_projection(x2d, w_qkv, b_qkv, compute_dtype)
    qkv = qkv2d[:M0].reshape(B, S_pad, 3 * H_pad)

    # --- 2) flash attention --------------------------------------------------
    n_q = S_pad // tq
    n_kv = S_pad // tk
    scale = 1.0 / math.sqrt(H)     # scale uses the *true* head dim

    kernel = functools.partial(_flash_kernel, scale=scale, tk=tk,
                               seq_len=S, seq_pad=S_pad)

    out = pl.pallas_call(
        kernel,
        out_shape=jax.ShapeDtypeStruct((B, S_pad, H_pad), out_dtype),
        grid_spec=pltpu.PrefetchScalarGridSpec(
            num_scalar_prefetch=0,
            grid=(B, n_q, n_kv),
            in_specs=[
                # q / k / v are block-slices of the same packed qkv array;
                # the last-dim block index selects the q/k/v slab.
                pl.BlockSpec((1, tq, H_pad), lambda b, qi, ki: (b, qi, 0)),  # Q
                pl.BlockSpec((1, tk, H_pad), lambda b, qi, ki: (b, ki, 1)),  # K
                pl.BlockSpec((1, tk, H_pad), lambda b, qi, ki: (b, ki, 2)),  # V
            ],
            out_specs=pl.BlockSpec((1, tq, H_pad), lambda b, qi, ki: (b, qi, 0)),
            scratch_shapes=[
                pltpu.VMEM((tq, 1), jnp.float32),      # running max
                pltpu.VMEM((tq, 1), jnp.float32),      # running denominator
                pltpu.VMEM((tq, H_pad), jnp.float32),  # running accumulator
            ],
        ),
        compiler_params=pltpu.CompilerParams(
            dimension_semantics=("parallel", "parallel", "arbitrary")),
    )(qkv, qkv, qkv)

    return out[:, :S, :H]


def attention_head_reference(x, wq, bq, wk, bk, wv, bv):
    q = x @ wq + bq
    k = x @ wk + bk
    v = x @ wv + bv
    scores = jnp.einsum("bsh,bth->bst", q, k) / math.sqrt(q.shape[-1])
    weights = jax.nn.softmax(scores, axis=-1)
    return jnp.einsum("bst,bth->bsh", weights, v)


if __name__ == "__main__":
    B, S, E, H = 2, 8, 32, 16   # batch, seq, embed_dim, head_dim

    key = jax.random.PRNGKey(0)
    kx, kq, kbq, kk, kbk, kv, kbv = jax.random.split(key, 7)

    x = jax.random.normal(kx, (B, S, E), dtype=jnp.float32)

    # Deterministic parameter init (mimics nn.Linear's uniform(-1/sqrt(E), 1/sqrt(E)))
    bound = 1.0 / math.sqrt(E)
    wq = jax.random.uniform(kq, (E, H), jnp.float32, -bound, bound)
    bq = jax.random.uniform(kbq, (1, H), jnp.float32, -bound, bound)
    wk = jax.random.uniform(kk, (E, H), jnp.float32, -bound, bound)
    bk = jax.random.uniform(kbk, (1, H), jnp.float32, -bound, bound)
    wv = jax.random.uniform(kv, (E, H), jnp.float32, -bound, bound)
    bv = jax.random.uniform(kbv, (1, H), jnp.float32, -bound, bound)

    out = attention_head(x, wq, bq, wk, bk, wv, bv)
    out = jax.block_until_ready(out)

    ref = attention_head_reference(x, wq, bq, wk, bk, wv, bv)
    assert out.shape == (B, S, H)
    # Tolerance loosened (vs 1e-5) only because of pl.reciprocal(approx=True)
    # in the epilogue; all matmul operands/accumulation are f32 in this config.
    assert jnp.allclose(out, ref, atol=5e-3, rtol=5e-3), "mismatch vs reference"

    print("KERNEL_OK")
</pallas_src>

<mosaic_0001>
module attributes {stable_mosaic.version = 11 : i64} {
  func.func @_qkv_proj_kernel(%arg0: i32, %arg1: memref<16x32xf32, #tpu.memory_space<vmem>>, %arg2: memref<32x384xf32, #tpu.memory_space<vmem>>, %arg3: memref<1x384xf32, #tpu.memory_space<vmem>>, %arg4: memref<16x384xf32, #tpu.memory_space<vmem>>) attributes {dimension_semantics = [#tpu.dimension_semantics<parallel>], iteration_bounds = array<i64: 1>, scalar_prefetch = 0 : i64, scratch_operands = 0 : i64, tpu.core_type = #tpu.core_type<tc>, window_params = [{transform_indices = @transform_0, window_bounds = array<i64: 16, 32>}, {pipeline_mode = #tpu.pipeline_mode<synchronous>, transform_indices = @transform_1, window_bounds = array<i64: 32, 384>}, {pipeline_mode = #tpu.pipeline_mode<synchronous>, transform_indices = @transform_2, window_bounds = array<i64: 1, 384>}, {transform_indices = @transform_3, window_bounds = array<i64: 16, 384>}]} {
    %c0 = arith.constant 0 : index
    %c0_0 = arith.constant 0 : index
    %0 = vector.load %arg1[%c0, %c0_0] : memref<16x32xf32, #tpu.memory_space<vmem>>, vector<16x32xf32>
    %c0_1 = arith.constant 0 : index
    %c0_2 = arith.constant 0 : index
    %1 = vector.load %arg2[%c0_1, %c0_2] : memref<32x384xf32, #tpu.memory_space<vmem>>, vector<32x384xf32>
    %cst = arith.constant dense<0.000000e+00> : vector<16x384xf32>
    %2 = tpu.matmul %0, %1, %cst {dimension_numbers = #tpu.dot_dimension_numbers<[1], [0], [0], [1], [0, 0, 1, 1], [], []>} : vector<16x32xf32>, vector<32x384xf32>, vector<16x384xf32> -> vector<16x384xf32>
    %c0_3 = arith.constant 0 : index
    %c0_4 = arith.constant 0 : index
    %3 = vector.load %arg3[%c0_3, %c0_4] : memref<1x384xf32, #tpu.memory_space<vmem>>, vector<1x384xf32>
    %4 = vector.broadcast %3 : vector<1x384xf32> to vector<16x384xf32>
    %5 = arith.addf %2, %4 : vector<16x384xf32>
    %c0_5 = arith.constant 0 : index
    %c0_6 = arith.constant 0 : index
    %6 = vector.load %arg4[%c0_5, %c0_6] : memref<16x384xf32, #tpu.memory_space<vmem>>, vector<16x384xf32>
    tpu.vector_store %arg4[%c0_5, %c0_6], %5 {strides = array<i32>} : memref<16x384xf32, #tpu.memory_space<vmem>>, vector<16x384xf32>,
    return
  }
  func.func @transform_0(%arg0: i32) -> (i32, i32) {
    %c0_i32 = arith.constant 0 : i32
    %c0_i32_0 = arith.constant 0 : i32
    return %arg0, %c0_i32 : i32, i32
  }
  func.func @transform_1(%arg0: i32) -> (i32, i32) {
    %c0_i32 = arith.constant 0 : i32
    %c0_i32_0 = arith.constant 0 : i32
    %c0_i32_1 = arith.constant 0 : i32
    return %c0_i32, %c0_i32_0 : i32, i32
  }
  func.func @transform_2(%arg0: i32) -> (i32, i32) {
    %c0_i32 = arith.constant 0 : i32
    %c0_i32_0 = arith.constant 0 : i32
    %c0_i32_1 = arith.constant 0 : i32
    return %c0_i32, %c0_i32_0 : i32, i32
  }
  func.func @transform_3(%arg0: i32) -> (i32, i32) {
    %c0_i32 = arith.constant 0 : i32
    %c0_i32_0 = arith.constant 0 : i32
    return %arg0, %c0_i32 : i32, i32
  }
}

</mosaic_0001>

<llo_original>
// kernel: tpu_custom_call.1
$region0: #{tpu_custom_call.1}
  #allocation0 [shape = 'u32[]', space=smem, size = 0x4, offset = 0x4, fixed_abs, tag = 'smem constant byte address 0x4 - core index']
  #allocation1 [shape = 'u32[144,128]{1,0:T(1,128)}', space=vmem, size = 0x12000, scoped, tag = 'internal scratch']
  %s0 = inlined_call_operand.hbm [shape: f32[16,32], index: 0, kind: input, shape index: {}]
  %s1 = inlined_call_operand.hbm [shape: f32[32,384], index: 1, kind: input, shape index: {}]
  %s2 = inlined_call_operand.vmem [shape: f32[1,384], index: 2, kind: input, shape index: {}]
  %s3 = inlined_call_operand.hbm [shape: f32[16,384], index: 3, kind: output, shape index: {}]
  %s4 = sld [smem:[#allocation0]]
  $region30: #{tpu_custom_call.1} parent=0
    _
  %s6 = ssub.s32 1, %s4
  %s7 = scalar_select 0, %s6, %s4
  $region1: #{tpu_custom_call.1} parent=0
    #allocation2 [shape = 'u8[8192]{0}', space=vmem, size = 0x2000, scoped, tag = 'input window, operand 0, single buffered']
    #allocation3 [shape = 's32[1]{0}', space=sflag, size = 0x4, scoped, tag = 'scoped memory for tpu_custom_call.1']
    #allocation4 [shape = 's32[1]{0}', space=sflag, size = 0x4, scoped, tag = 'scoped memory for tpu_custom_call.1']
    #allocation5 [shape = 'u8[49152]{0}', space=vmem, size = 0xc000, scoped, tag = 'input window, operand 1, single buffered']
    #allocation6 [shape = 's32[1]{0}', space=sflag, size = 0x4, scoped, tag = 'scoped memory for tpu_custom_call.1']
    #allocation7 [shape = 'u8[24576]{0}', space=vmem, size = 0x6000, scoped, tag = 'output window, operand 0, single buffered']
    %8 = vsyncpa [#allocation3], 0
    %9 = vsyncpa [#allocation6], 0
    %10 = vsyncpa [#allocation4], 0
    // Predicated region
    $region2: #{tpu_custom_call.1} parent=1 // pred_check
      _
    $region3: #{tpu_custom_call.1} parent=1 // pred_check_branch
      %12 = sbr.rel (0) target = $region5
    $region4: #{tpu_custom_call.1} parent=1 // pred_region
      %s14 = ssub.s32 256, 256
      %15 = vsyncadd [#allocation3], %s14
      %s16 = sshll.u32 [#allocation2], 4
      %s17 = int_to_ptr.vmem [resolvable:$true] %s16
      %22 = dma.hbm_to_vmem [thread:$0]  %s0, 256, %s17, [#allocation3], 128, 128, 8
    $region5: #{tpu_custom_call.1} parent=1 // pred_fallthru
      _
    // Predicated region
    $region6: #{tpu_custom_call.1} parent=1 // pred_check
      _
    $region7: #{tpu_custom_call.1} parent=1 // pred_check_branch
      %24 = sbr.rel (0) target = $region9
    $region8: #{tpu_custom_call.1} parent=1 // pred_region
      %s26 = ssub.s32 1536, 1536
      %27 = vsyncadd [#allocation6], %s26
      %s28 = sshll.u32 [#allocation5], 4
      %s29 = int_to_ptr.vmem [resolvable:$true] %s28
      %34 = dma.hbm_to_vmem [thread:$0]  %s1, 1536, %s29, [#allocation6], 384, 384, 24
    $region9: #{tpu_custom_call.1} parent=1 // pred_fallthru
      _
    // Predicated region
    $region10: #{tpu_custom_call.1} parent=1 // pred_check
      _
    $region11: #{tpu_custom_call.1} parent=1 // pred_check_branch
      %36 = sbr.rel (0) target = $region13
    $region12: #{tpu_custom_call.1} parent=1 // pred_region
      _
    $region13: #{tpu_custom_call.1} parent=1 // pred_fallthru
      _
    // Predicated region
    $region14: #{tpu_custom_call.1} parent=1 // pred_check
      _
    $region15: #{tpu_custom_call.1} parent=1 // pred_check_branch
      %38 = sbr.rel (0) target = $region17
    $region16: #{tpu_custom_call.1} parent=1 // pred_region
      %39 = dma.done [#allocation3], 256
    $region17: #{tpu_custom_call.1} parent=1 // pred_fallthru
      _
    // Predicated region
    $region18: #{tpu_custom_call.1} parent=1 // pred_check
      _
    $region19: #{tpu_custom_call.1} parent=1 // pred_check_branch
      %41 = sbr.rel (0) target = $region21
    $region20: #{tpu_custom_call.1} parent=1 // pred_region
      %42 = dma.done [#allocation6], 1536
    $region21: #{tpu_custom_call.1} parent=1 // pred_fallthru
      _
    %v43 = vld [vmem:[#allocation2] sm:$0xff]
    %v44 = vld [vmem:[#allocation2 + $0x8] sm:$0xff]
    %v45 = vld [vmem:[#allocation5] sm:$0xff]
    %v46 = vld [vmem:[#allocation5 + $0x8] sm:$0xff]
    %v47 = vld [vmem:[#allocation5 + $0x10] sm:$0xff]
    %v48 = vld [vmem:[#allocation5 + $0x18] sm:$0xff]
    %v49 = vld [vmem:[#allocation5 + $0x20] sm:$0xff]
    %v50 = vld [vmem:[#allocation5 + $0x28] sm:$0xff]
    %v51 = vld [vmem:[#allocation5 + $0x30] sm:$0xff]
    %v52 = vld [vmem:[#allocation5 + $0x38] sm:$0xff]
    %v53 = vld [vmem:[#allocation5 + $0x40] sm:$0xff]
    %v54 = vld [vmem:[#allocation5 + $0x48] sm:$0xff]
    %v55 = vld [vmem:[#allocation5 + $0x50] sm:$0xff]
    %v56 = vld [vmem:[#allocation5 + $0x58] sm:$0xff]
    %v57 = vld [vmem:[%s2] sm:$0x7]
    %v59 = vlaneseq
    %v60 = vshrl.u32 %v59, 7
    %v61 = vsub.s32 0, %v60
    %v62 = vrot.slane %v57, %v61
    %v63 = vlaneseq
    %v64 = vshrl.u32 %v63, 7
    %v65 = vsub.s32 1, %v64
    %v66 = vrot.slane %v57, %v65
    %v67 = vlaneseq
    %v68 = vshrl.u32 %v67, 7
    %v69 = vsub.s32 2, %v68
    %v70 = vrot.slane %v57, %v69
    %vm74 = vcmask 261120
    %v76 = vsel %vm74, %v43, 0
    %v79 = vsel %vm74, %v44, 0
    %81 = vmatprep.subr.mxu0 %v46
    %82 = vmatpush1.msra.mxu0 %v45
    %83 = vmatprep.subr.mxu0 %v49
    %84 = vmatpush1.msra.mxu0 %v48
    %85 = vmatprep.subr.mxu0 %v52
    %86 = vmatpush1.msra.mxu0 %v51
    %87 = vmatprep.subr.mxu0 %v55
    %88 = vmatpush1.msra.mxu0 %v54
    %89 = vmatprep.subr.mxu0 0.0
    %90 = vmatpush1.msra.mxu0 0.0
    %91 = vmatprep.subr.mxu0 0.0
    %92 = vmatpush1.msra.mxu0 0.0
    %93 = vmatprep.subr.mxu0 0.0
    %94 = vmatpush1.msra.mxu0 0.0
    %95 = vmatprep.subr.mxu0 0.0
    %96 = vmatpush1.msra.mxu0 0.0
    %97 = vmatprep.subr.mxu0 0.0
    %98 = vmatpush1.msra.mxu0 0.0
    %99 = vmatprep.subr.mxu0 0.0
    %100 = vmatpush1.msra.mxu0 0.0
    %101 = vmatprep.subr.mxu0 0.0
    %102 = vmatpush1.msra.mxu0 0.0
    %103 = vmatprep.subr.mxu0 0.0
    %104 = vmatpush1.msra.mxu0 0.0
    %105 = vmatprep.subr.mxu0 0.0
    %106 = vmatpush1.msra.mxu0 0.0
    %107 = vmatprep.subr.mxu0 0.0
    %108 = vmatpush1.msra.mxu0 0.0
    %109 = vmatprep.subr.mxu0 0.0
    %110 = vmatpush1.msra.mxu0 0.0
    %111 = vmatprep.subr.mxu0 0.0
    %112 = vmatpush1.msra.mxu0 0.0
    %113 = vmatprep.subr.mxu0 0.0
    %114 = vmatpush1.msra.mxu0 0.0
    %115 = vmatprep.subr.mxu0 0.0
    %116 = vmatpush1.msra.mxu0 0.0
    %117 = vmatprep.subr.mxu0 0.0
    %118 = vmatpush1.msra.mxu0 0.0
    %119 = vmatprep.subr.mxu0 0.0
    %120 = vmatpush1.msra.mxu0 0.0
    %121 = vmatprep.subr.mxu0 0.0
    %122 = vmatpush1.msra.mxu0 0.0
    %123 = vmatprep.subr.mxu0 0.0
    %124 = vmatpush1.msra.mxu0 0.0
    %125 = vmatprep.subr.mxu0 0.0
    %126 = vmatpush1.msra.mxu0 0.0
    %127 = vmatprep.subr.mxu0 0.0
    %128 = vmatpush1.msra.mxu0 0.0
    %129 = vmatprep.subr.mxu0 0.0
    %130 = vmatpush1.msra.mxu0 0.0
    %131 = vmatprep.subr.mxu0 0.0
    %132 = vmatpush1.msra.mxu0 0.0
    %133 = vmatprep.subr.mxu0 0.0
    %134 = vmatpush1.msra.mxu0 0.0
    %135 = vmatprep.subr.mxu0 0.0
    %136 = vmatpush1.msra.mxu0 0.0
    %137 = vmatprep.subr.mxu0 0.0
    %138 = vmatpush1.msra.mxu0 0.0
    %139 = vmatprep.subr.mxu0 0.0
    %140 = vmatpush1.msra.mxu0 0.0
    %141 = vmatprep.subr.mxu0 0.0
    %142 = vmatpush1.msra.mxu0 0.0
    %143 = vmatprep.subr.mxu0 0.0
    %144 = vmatpush1.msra.mxu0 0.0
    %145 = vmatprep.mubr.f32.mxu0 0.0
    %146 = vmatmul.mubr.f32.gmra.mrb[0].mxu0 %v76
    %v147 = vpop.f32.mrb[0].mxu0
    %v148 = vadd.f32 %v62, %v147
    %v149 = vpop.f32.mrb[0].mxu0
    %v150 = vadd.f32 %v66, %v149
    %151 = vmatprep.mubr.f32.mxu0 0.0
    %152 = vmatmul.mubr.f32.gmra.mrb[0].mxu0 %v79
    %v153 = vpop.f32.mrb[0].mxu0
    %v154 = vadd.f32 %v62, %v153
    %v155 = vpop.f32.mrb[0].mxu0
    %v156 = vadd.f32 %v66, %v155
    %157 = vdwg.mxu0
    %158 = vmatprep.subr.mxu0 0.0
    %159 = vmatpush1.msra.mxu0 %v47
    %160 = vmatprep.subr.mxu0 0.0
    %161 = vmatpush1.msra.mxu0 %v50
    %162 = vmatprep.subr.mxu0 0.0
    %163 = vmatpush1.msra.mxu0 %v53
    %164 = vmatprep.subr.mxu0 0.0
    %165 = vmatpush1.msra.mxu0 %v56
    %166 = vmatprep.subr.mxu0 0.0
    %167 = vmatpush1.msra.mxu0 0.0
    %168 = vmatprep.subr.mxu0 0.0
    %169 = vmatpush1.msra.mxu0 0.0
    %170 = vmatprep.subr.mxu0 0.0
    %171 = vmatpush1.msra.mxu0 0.0
    %172 = vmatprep.subr.mxu0 0.0
    %173 = vmatpush1.msra.mxu0 0.0
    %174 = vmatprep.subr.mxu0 0.0
    %175 = vmatpush1.msra.mxu0 0.0
    %176 = vmatprep.subr.mxu0 0.0
    %177 = vmatpush1.msra.mxu0 0.0
    %178 = vmatprep.subr.mxu0 0.0
    %179 = vmatpush1.msra.mxu0 0.0
    %180 = vmatprep.subr.mxu0 0.0
    %181 = vmatpush1.msra.mxu0 0.0
    %182 = vmatprep.subr.mxu0 0.0
    %183 = vmatpush1.msra.mxu0 0.0
    %184 = vmatprep.subr.mxu0 0.0
    %185 = vmatpush1.msra.mxu0 0.0
    %186 = vmatprep.subr.mxu0 0.0
    %187 = vmatpush1.msra.mxu0 0.0
    %188 = vmatprep.subr.mxu0 0.0
    %189 = vmatpush1.msra.mxu0 0.0
    %190 = vmatprep.subr.mxu0 0.0
    %191 = vmatpush1.msra.mxu0 0.0
    %192 = vmatprep.subr.mxu0 0.0
    %193 = vmatpush1.msra.mxu0 0.0
    %194 = vmatprep.subr.mxu0 0.0
    %195 = vmatpush1.msra.mxu0 0.0
    %196 = vmatprep.subr.mxu0 0.0
    %197 = vmatpush1.msra.mxu0 0.0
    %198 = vmatprep.subr.mxu0 0.0
    %199 = vmatpush1.msra.mxu0 0.0
    %200 = vmatprep.subr.mxu0 0.0
    %201 = vmatpush1.msra.mxu0 0.0
    %202 = vmatprep.subr.mxu0 0.0
    %203 = vmatpush1.msra.mxu0 0.0
    %204 = vmatprep.subr.mxu0 0.0
    %205 = vmatpush1.msra.mxu0 0.0
    %206 = vmatprep.subr.mxu0 0.0
    %207 = vmatpush1.msra.mxu0 0.0
    %208 = vmatprep.subr.mxu0 0.0
    %209 = vmatpush1.msra.mxu0 0.0
    %210 = vmatprep.subr.mxu0 0.0
    %211 = vmatpush1.msra.mxu0 0.0
    %212 = vmatprep.subr.mxu0 0.0
    %213 = vmatpush1.msra.mxu0 0.0
    %214 = vmatprep.subr.mxu0 0.0
    %215 = vmatpush1.msra.mxu0 0.0
    %216 = vmatprep.subr.mxu0 0.0
    %217 = vmatpush1.msra.mxu0 0.0
    %218 = vmatprep.subr.mxu0 0.0
    %219 = vmatpush1.msra.mxu0 0.0
    %220 = vmatprep.subr.mxu0 0.0
    %221 = vmatpush1.msra.mxu0 0.0
    %222 = vmatprep.mubr.f32.mxu0 0.0
    %223 = vmatmul.mubr.f32.gmra.mrb[0].mxu0 %v76
    %v224 = vpop.f32.mrb[0].mxu0
    %v225 = vadd.f32 %v70, %v224
    %v226 = vpop.f32.mrb[0].mxu0
    %227 = vmatprep.mubr.f32.mxu0 0.0
    %228 = vmatmul.mubr.f32.gmra.mrb[0].mxu0 %v79
    %v229 = vpop.f32.mrb[0].mxu0
    %v230 = vadd.f32 %v70, %v229
    %v231 = vpop.f32.mrb[0].mxu0
    %232 = vdwg.mxu0
    %233 = vst [vmem:[#allocation7] sm:$0xff] %v148
    %234 = vst [vmem:[#allocation7 + $0x8] sm:$0xff] %v150
    %235 = vst [vmem:[#allocation7 + $0x10] sm:$0xff] %v225
    %236 = vst [vmem:[#allocation7 + $0x18] sm:$0xff] %v154
    %237 = vst [vmem:[#allocation7 + $0x20] sm:$0xff] %v156
    %238 = vst [vmem:[#allocation7 + $0x28] sm:$0xff] %v230
    // Predicated region
    $region22: #{tpu_custom_call.1} parent=1 // pred_check
      _
    $region23: #{tpu_custom_call.1} parent=1 // pred_check_branch
      %240 = sbr.rel (0) target = $region25
    $region24: #{tpu_custom_call.1} parent=1 // pred_region
      %s242 = ssub.s32 768, 768
      %243 = vsyncadd [#allocation4], %s242
      %s244 = sshll.u32 [#allocation7], 4
      %s245 = int_to_ptr.vmem [resolvable:$true] %s244
      %250 = dma.vmem_to_hbm [thread:$0]  %s245, 768, %s3, [#allocation4], 384, 384, 24
    $region25: #{tpu_custom_call.1} parent=1 // pred_fallthru
      _
    // Predicated region
    $region26: #{tpu_custom_call.1} parent=1 // pred_check
      _
    $region27: #{tpu_custom_call.1} parent=1 // pred_check_branch
      %252 = sbr.rel (0) target = $region29
    $region28: #{tpu_custom_call.1} parent=1 // pred_region
      %253 = dma.done [#allocation4], 768
    $region29: #{tpu_custom_call.1} parent=1 // pred_fallthru
      _
    %254 = vsyncpa [#allocation3], 1
    %255 = vsyncpa [#allocation6], 1
    %256 = vsyncpa [#allocation4], 1

</llo_original>
